<compile_context>
chip_gen: v5e
topology: v5e:2x2
jax: 0.10.0
libtpu: 0.0.40
codegen_flags: <defaults>
</compile_context>

<pallas_src>
import numpy as np
import jax
import jax.numpy as jnp
from jax.experimental import pallas as pl
from jax.experimental.pallas import tpu as pltpu


# ---------------------------------------------------------------------------
# helpers
# ---------------------------------------------------------------------------

_TM = 128            # fixed row tile (MXU-friendly on all chips)
_TN_CAP = 256        # out tile cap (matches v6e/v7x 256-wide MXU)
_TK_CAP = 1024       # if d <= this, the head has NO K grid axis
_VMEM_LIMIT = 48 * 1024 * 1024   # <= v7x physical 64 MiB; plenty on v5e/v6e


def _round_up(a, b):
    return (a + b - 1) // b * b


def _choose_div_tile(d, cap, step=128):
    """Largest multiple of `step` <= cap that divides d (d is a multiple of step)."""
    best = step
    t = step
    while t <= min(d, cap):
        if d % t == 0:
            best = t
        t += step
    return best


def _ladder_capacity(n_sel, tm=_TM):
    """Smallest power-of-two multiple of tm >= n_sel (bounded set of shapes)."""
    tiles = max(1, -(-n_sel // tm))
    tiles = 1 << (tiles - 1).bit_length()
    return tm * tiles


def _pad2d(a, rows, cols):
    r, c = a.shape
    if r == rows and c == cols:
        return a
    return jnp.pad(a, ((0, rows - r), (0, cols - c)))


# ---------------------------------------------------------------------------
# Pallas kernels
# ---------------------------------------------------------------------------

def _linear_bias_kernel(x_ref, w_ref, b_ref, o_ref):
    # y = x @ W + b, tiled over (rows, out, K). The f32 output block is resident
    # across the (last, "arbitrary") K axis, so we accumulate directly into it:
    # bias written at k == 0, MXU partials added per K step. With d <= _TK_CAP
    # the K axis has a single step and this is just one matmul + bias.
    k = pl.program_id(2)

    @pl.when(k == 0)
    def _init():
        o_ref[...] = jnp.broadcast_to(b_ref[...], o_ref.shape).astype(o_ref.dtype)

    o_ref[...] += jnp.dot(x_ref[...], w_ref[...],
                          preferred_element_type=jnp.float32)


def _tail_double_kernel(x_ref, w1_ref, w2_ref, b2_ref, o_ref, h_ref):
    # Fused tail (reduce_factor > 1): h = sel @ W1 once per row tile (out axis
    # innermost), kept in bf16 VMEM scratch; then y = h @ W2 + b2 per out tile.
    # NOTE: h_ref is only written at j == 0 — the out axis MUST stay "arbitrary"
    # (do not mark it "parallel" for megacore).
    @pl.when(pl.program_id(1) == 0)
    def _compute_h():
        h_ref[...] = jnp.dot(x_ref[...], w1_ref[...],
                             preferred_element_type=jnp.float32).astype(h_ref.dtype)

    o_ref[...] = (jnp.dot(h_ref[...], w2_ref[...],
                          preferred_element_type=jnp.float32)
                  + b2_ref[...]).astype(o_ref.dtype)


# ---------------------------------------------------------------------------
# pallas_call wrappers
# ---------------------------------------------------------------------------

def linear_pallas(x, w, b):
    """y = x @ w + b.  x: (n, d) bf16, n % _TM == 0, d % 128 == 0; w: (d, d_out) bf16."""
    n, d = x.shape
    d_w, d_out = w.shape
    assert d == d_w and n % _TM == 0 and d % 128 == 0 and d_out % 128 == 0
    tm = _TM
    tn = _choose_div_tile(d_out, _TN_CAP)
    tk = d if d <= _TK_CAP else _choose_div_tile(d, _TK_CAP)
    grid = (n // tm, d_out // tn, d // tk)

    flops = 2 * n * d * d_out
    bytes_accessed = (x.size * x.dtype.itemsize + w.size * w.dtype.itemsize
                      + b.size * b.dtype.itemsize + n * d_out * 4)

    return pl.pallas_call(
        _linear_bias_kernel,
        out_shape=jax.ShapeDtypeStruct((n, d_out), jnp.float32),
        grid=grid,
        in_specs=[
            pl.BlockSpec((tm, tk), lambda i, j, k: (i, k)),
            pl.BlockSpec((tk, tn), lambda i, j, k: (k, j)),
            pl.BlockSpec((1, tn), lambda i, j, k: (0, j)),
        ],
        out_specs=pl.BlockSpec((tm, tn), lambda i, j, k: (i, j)),
        compiler_params=pltpu.CompilerParams(
            dimension_semantics=("parallel", "parallel", "arbitrary"),
            vmem_limit_bytes=_VMEM_LIMIT),
        cost_estimate=pl.CostEstimate(flops=int(flops), transcendentals=0,
                                      bytes_accessed=int(bytes_accessed)),
    )(x, w, b)


def tail_double_pallas(sel, w1, w2, b2):
    """y = (sel @ w1) @ w2 + b2 with the intermediate kept in VMEM (bf16)."""
    n, d = sel.shape
    hid = w1.shape[1]
    d_out = w2.shape[1]
    assert n % _TM == 0 and d % 128 == 0 and hid % 128 == 0 and d_out % 128 == 0
    tm = _TM
    tn = _choose_div_tile(d_out, _TN_CAP)
    grid = (n // tm, d_out // tn)

    flops = 2 * n * (d * hid + hid * d_out)
    bytes_accessed = (sel.size * sel.dtype.itemsize + w1.size * w1.dtype.itemsize
                      + w2.size * w2.dtype.itemsize + b2.size * b2.dtype.itemsize
                      + n * d_out * 4)

    return pl.pallas_call(
        _tail_double_kernel,
        out_shape=jax.ShapeDtypeStruct((n, d_out), jnp.float32),
        grid=grid,
        in_specs=[
            pl.BlockSpec((tm, d), lambda i, j: (i, 0)),     # re-DMA'd only when i changes
            pl.BlockSpec((d, hid), lambda i, j: (0, 0)),
            pl.BlockSpec((hid, tn), lambda i, j: (0, j)),
            pl.BlockSpec((1, tn), lambda i, j: (0, j)),
        ],
        out_specs=pl.BlockSpec((tm, tn), lambda i, j: (i, j)),
        scratch_shapes=[pltpu.VMEM((tm, hid), jnp.bfloat16)],
        compiler_params=pltpu.CompilerParams(
            dimension_semantics=("parallel", "arbitrary"),
            vmem_limit_bytes=_VMEM_LIMIT),
        cost_estimate=pl.CostEstimate(flops=int(flops), transcendentals=0,
                                      bytes_accessed=int(bytes_accessed)),
    )(sel, w1, w2, b2)


# ---------------------------------------------------------------------------
# AdaptiveSoftmax module (parameters built deterministically in-script)
# ---------------------------------------------------------------------------

class AdaptiveSoftmaxPallas:
    def __init__(self, input_size, cutoff, reduce_factor=4, seed=0):
        self.input_size = input_size
        self.cutoff = list(cutoff)
        self.reduce_factor = reduce_factor
        self.output_size = cutoff[0] + len(cutoff) - 1

        self.d_pad = _round_up(input_size, 128)
        self.out_pad = _round_up(self.output_size, 128)

        key = jax.random.PRNGKey(seed)
        scale = 1.0 / np.sqrt(input_size)

        def uniform(k, shape, s):
            return jax.random.uniform(k, shape, minval=-s, maxval=s,
                                      dtype=jnp.float32)

        k_hw, k_hb, key = jax.random.split(key, 3)
        head_w = uniform(k_hw, (input_size, self.output_size), scale)
        head_b = uniform(k_hb, (1, self.output_size), scale)
        # padded, lane-dense bf16 weights; f32 bias (added in f32 in-kernel)
        self.head_w = _pad2d(head_w, self.d_pad, self.out_pad).astype(jnp.bfloat16)
        self.head_b = _pad2d(head_b, 1, self.out_pad)
        self.head_true = (head_w, head_b)

        self.tail = []        # padded bf16 params used by the kernels
        self.tail_true = []   # unpadded f32 params for the reference
        for i in range(len(cutoff) - 1):
            out_i = cutoff[i + 1] - cutoff[i]
            o_pad = _round_up(out_i, 128)
            if reduce_factor == 1:
                kw, kb, key = jax.random.split(key, 3)
                w = uniform(kw, (input_size, out_i), scale)
                b = uniform(kb, (1, out_i), scale)
                self.tail.append(("single",
                                  _pad2d(w, self.d_pad, o_pad).astype(jnp.bfloat16),
                                  _pad2d(b, 1, o_pad),
                                  out_i))
                self.tail_true.append(("single", w, b))
            else:
                hid = input_size // (reduce_factor ** i)
                h_pad = _round_up(hid, 128)
                k1, k2, kb, key = jax.random.split(key, 4)
                scale_h = 1.0 / np.sqrt(hid)
                w1 = uniform(k1, (input_size, hid), scale)          # no bias
                w2 = uniform(k2, (hid, out_i), scale_h)
                b2 = uniform(kb, (1, out_i), scale_h)
                self.tail.append(("double",
                                  _pad2d(w1, self.d_pad, h_pad).astype(jnp.bfloat16),
                                  _pad2d(w2, h_pad, o_pad).astype(jnp.bfloat16),
                                  _pad2d(b2, 1, o_pad),
                                  out_i))
                self.tail_true.append(("double", w1, w2, b2))

    def set_target(self, target):
        # TODO(synk): bucket membership yields data-dependent output shapes
        # (variable row counts / None), matching the PyTorch module, so this
        # single host round-trip is unavoidable; the row gather itself runs
        # on-device (jnp.take) and everything else stays on the TPU.
        target_np = np.asarray(target)
        self.id = []
        for i in range(len(self.cutoff) - 1):
            mask = (target_np >= self.cutoff[i]) & (target_np < self.cutoff[i + 1])
            if mask.any():
                self.id.append(np.nonzero(mask)[0].astype(np.int32))
            else:
                self.id.append(None)

    def forward(self, x, target=None):
        n, _ = x.shape
        n_pad = _round_up(n, _TM)
        xp = _pad2d(x, n_pad, self.d_pad).astype(jnp.bfloat16)

        head = linear_pallas(xp, self.head_w, self.head_b)
        output = [head[:n, :self.output_size]]

        if target is not None:
            self.set_target(target)

        for i in range(len(self.id)):
            ids = self.id[i]
            if ids is None:
                output.append(None)
                continue
            n_sel = int(ids.shape[0])
            # Capacity ladder: power-of-two multiple of the row tile -> bounded
            # recompiles, wasted rows < 2x live rows (instead of full batch).
            cap = _ladder_capacity(n_sel)
            idx = jnp.asarray(np.pad(ids, (0, cap - n_sel)))      # padded entries -> row 0
            sel = jnp.take(xp, idx, axis=0)                       # on-device gather, (cap, d_pad)
            t = self.tail[i]
            if t[0] == "single":
                _, w, b, out_i = t
                y = linear_pallas(sel, w, b)
            else:
                _, w1, w2, b2, out_i = t
                y = tail_double_pallas(sel, w1, w2, b2)
            output.append(y[:n_sel, :out_i])
        return output


# ---------------------------------------------------------------------------
# Pure-JAX reference (same math: bf16 inputs/weights, f32 accumulation/bias)
# ---------------------------------------------------------------------------

def _reference_forward(m, x, target):
    xb = x.astype(jnp.bfloat16)
    head_w, head_b = m.head_true
    out = [jnp.dot(xb, head_w.astype(jnp.bfloat16),
                   preferred_element_type=jnp.float32) + head_b]

    target_np = np.asarray(target)
    for i in range(len(m.cutoff) - 1):
        mask = (target_np >= m.cutoff[i]) & (target_np < m.cutoff[i + 1])
        if not mask.any():
            out.append(None)
            continue
        idx = jnp.asarray(np.nonzero(mask)[0].astype(np.int32))
        sel = jnp.take(xb, idx, axis=0)
        t = m.tail_true[i]
        if t[0] == "single":
            _, w, b = t
            out.append(jnp.dot(sel, w.astype(jnp.bfloat16),
                               preferred_element_type=jnp.float32) + b)
        else:
            _, w1, w2, b2 = t
            h = jnp.dot(sel, w1.astype(jnp.bfloat16),
                        preferred_element_type=jnp.float32)
            out.append(jnp.dot(h.astype(jnp.bfloat16), w2.astype(jnp.bfloat16),
                               preferred_element_type=jnp.float32) + b2)
    return out


if __name__ == "__main__":
    input_size = 256
    cutoff = [128, 320, 512]
    batch = 96

    key = jax.random.PRNGKey(0)
    kx, kt = jax.random.split(key)
    x = jax.random.normal(kx, (batch, input_size), dtype=jnp.float32)
    target = jax.random.randint(kt, (batch,), 0, cutoff[-1], dtype=jnp.int32)

    m = AdaptiveSoftmaxPallas(input_size, cutoff, reduce_factor=4, seed=0)
    outputs = m.forward(x, target)
    outputs = [o if o is None else jax.block_until_ready(o) for o in outputs]

    ref = _reference_forward(m, x, target)

    ok = True
    for o, r in zip(outputs, ref):
        if o is None or r is None:
            ok = ok and (o is None and r is None)
            continue
        o_np = np.asarray(o)
        r_np = np.asarray(r, dtype=np.float32)
        if o_np.shape != r_np.shape or not np.allclose(o_np, r_np,
                                                       atol=1e-2, rtol=1e-2):
            ok = False

    print("KERNEL_OK" if ok else "KERNEL_MISMATCH")
</pallas_src>

<mosaic_0001>
module attributes {stable_mosaic.version = 11 : i64} {
  func.func @_linear_bias_kernel(%arg0: i32, %arg1: i32, %arg2: i32, %arg3: memref<128x256xbf16, #tpu.memory_space<vmem>>, %arg4: memref<256x256xbf16, #tpu.memory_space<vmem>>, %arg5: memref<1x256xf32, #tpu.memory_space<vmem>>, %arg6: memref<128x256xf32, #tpu.memory_space<vmem>>) attributes {dimension_semantics = [#tpu.dimension_semantics<parallel>, #tpu.dimension_semantics<parallel>, #tpu.dimension_semantics<arbitrary>], iteration_bounds = array<i64: 1, 1, 1>, scalar_prefetch = 0 : i64, scratch_operands = 0 : i64, tpu.core_type = #tpu.core_type<tc>, window_params = [{transform_indices = @transform_0, window_bounds = array<i64: 128, 256>}, {transform_indices = @transform_1, window_bounds = array<i64: 256, 256>}, {transform_indices = @transform_2, window_bounds = array<i64: 1, 256>}, {transform_indices = @transform_3, window_bounds = array<i64: 128, 256>}]} {
    %c0_i32 = arith.constant 0 : i32
    %0 = arith.cmpi eq, %arg2, %c0_i32 : i32
    %1 = arith.extui %0 : i1 to i32
    %c0_i32_0 = arith.constant 0 : i32
    %2 = arith.cmpi ne, %1, %c0_i32_0 : i32
    scf.if %2 {
      %c0_8 = arith.constant 0 : index
      %c0_9 = arith.constant 0 : index
      %9 = vector.load %arg5[%c0_8, %c0_9] : memref<1x256xf32, #tpu.memory_space<vmem>>, vector<1x256xf32>
      %10 = vector.shape_cast %9 : vector<1x256xf32> to vector<1x256xf32>
      %11 = vector.broadcast %10 : vector<1x256xf32> to vector<128x256xf32>
      %c0_10 = arith.constant 0 : index
      %c0_11 = arith.constant 0 : index
      %12 = vector.load %arg6[%c0_10, %c0_11] : memref<128x256xf32, #tpu.memory_space<vmem>>, vector<128x256xf32>
      tpu.vector_store %arg6[%c0_10, %c0_11], %11 {strides = array<i32>} : memref<128x256xf32, #tpu.memory_space<vmem>>, vector<128x256xf32>,
    } else {
    }
    %c0 = arith.constant 0 : index
    %c0_1 = arith.constant 0 : index
    %3 = vector.load %arg6[%c0, %c0_1] : memref<128x256xf32, #tpu.memory_space<vmem>>, vector<128x256xf32>
    %c0_2 = arith.constant 0 : index
    %c0_3 = arith.constant 0 : index
    %4 = vector.load %arg3[%c0_2, %c0_3] : memref<128x256xbf16, #tpu.memory_space<vmem>>, vector<128x256xbf16>
    %c0_4 = arith.constant 0 : index
    %c0_5 = arith.constant 0 : index
    %5 = vector.load %arg4[%c0_4, %c0_5] : memref<256x256xbf16, #tpu.memory_space<vmem>>, vector<256x256xbf16>
    %cst = arith.constant dense<0.000000e+00> : vector<128x256xf32>
    %6 = tpu.matmul %4, %5, %cst {dimension_numbers = #tpu.dot_dimension_numbers<[1], [0], [0], [1], [0, 0, 1, 1], [], []>} : vector<128x256xbf16>, vector<256x256xbf16>, vector<128x256xf32> -> vector<128x256xf32>
    %7 = arith.addf %3, %6 : vector<128x256xf32>
    %c0_6 = arith.constant 0 : index
    %c0_7 = arith.constant 0 : index
    %8 = vector.load %arg6[%c0_6, %c0_7] : memref<128x256xf32, #tpu.memory_space<vmem>>, vector<128x256xf32>
    tpu.vector_store %arg6[%c0_6, %c0_7], %7 {strides = array<i32>} : memref<128x256xf32, #tpu.memory_space<vmem>>, vector<128x256xf32>,
    return
  }
  func.func @transform_0(%arg0: i32, %arg1: i32, %arg2: i32) -> (i32, i32) {
    %c0_i32 = arith.constant 0 : i32
    return %arg0, %arg2 : i32, i32
  }
  func.func @transform_1(%arg0: i32, %arg1: i32, %arg2: i32) -> (i32, i32) {
    %c0_i32 = arith.constant 0 : i32
    return %arg2, %arg1 : i32, i32
  }
  func.func @transform_2(%arg0: i32, %arg1: i32, %arg2: i32) -> (i32, i32) {
    %c0_i32 = arith.constant 0 : i32
    %c0_i32_0 = arith.constant 0 : i32
    return %c0_i32, %arg1 : i32, i32
  }
  func.func @transform_3(%arg0: i32, %arg1: i32, %arg2: i32) -> (i32, i32) {
    %c0_i32 = arith.constant 0 : i32
    return %arg0, %arg1 : i32, i32
  }
}

</mosaic_0001>

<llo_original>
// kernel: tpu_custom_call.1
$region0: #{tpu_custom_call.1}
  #allocation0 [shape = 'u32[]', space=smem, size = 0x4, offset = 0x4, fixed_abs, tag = 'smem constant byte address 0x4 - core index']
  #allocation1 [shape = 'u32[72,128]{1,0:T(1,128)}', space=vmem, size = 0x9000, scoped, tag = 'internal scratch']
  %s0 = inlined_call_operand.hbm [shape: bf16[128,256], index: 0, kind: input, shape index: {}]
  %s1 = inlined_call_operand.hbm [shape: bf16[256,256], index: 1, kind: input, shape index: {}]
  %s2 = inlined_call_operand.hbm [shape: f32[1,256], index: 2, kind: input, shape index: {}]
  %s3 = inlined_call_operand.hbm [shape: f32[128,256], index: 3, kind: output, shape index: {}]
  %s4 = sld [smem:[#allocation0]]
  $region38: #{tpu_custom_call.1} parent=0
    _
  %s6 = ssub.s32 1, %s4
  %s7 = scalar_select 0, %s6, %s4
  $region1: #{tpu_custom_call.1} parent=0
    #allocation2 [shape = 'u8[65536]{0}', space=vmem, size = 0x10000, scoped, tag = 'input window, operand 0, single buffered']
    #allocation3 [shape = 's32[1]{0}', space=sflag, size = 0x4, scoped, tag = 'scoped memory for tpu_custom_call.1']
    #allocation4 [shape = 's32[1]{0}', space=sflag, size = 0x4, scoped, tag = 'scoped memory for tpu_custom_call.1']
    #allocation5 [shape = 'u8[131072]{0}', space=vmem, size = 0x20000, scoped, tag = 'input window, operand 1, single buffered']
    #allocation6 [shape = 's32[1]{0}', space=sflag, size = 0x4, scoped, tag = 'scoped memory for tpu_custom_call.1']
    #allocation7 [shape = 'u8[1024]{0}', space=vmem, size = 0x400, scoped, tag = 'input window, operand 2, single buffered']
    #allocation8 [shape = 'u8[131072]{0}', space=vmem, size = 0x20000, scoped, tag = 'output window, operand 0, single buffered']
    %8 = vsyncpa [#allocation3], 0
    %9 = vsyncpa [#allocation6], 0
    %10 = vsyncpa [#allocation4], 0
    // Predicated region
    $region2: #{tpu_custom_call.1} parent=1 // pred_check
      _
    $region3: #{tpu_custom_call.1} parent=1 // pred_check_branch
      %12 = sbr.rel (0) target = $region5
    $region4: #{tpu_custom_call.1} parent=1 // pred_region
      %14 = vsyncadd [#allocation3], 0
      %s15 = sshll.u32 %s0, 4
      %s16 = int_to_ptr.hbm [resolvable:$true] %s15
      %s17 = sshll.u32 [#allocation2], 4
      %s18 = int_to_ptr.vmem [resolvable:$true] %s17
      %23 = dma.hbm_to_vmem [thread:$0]  %s16, 2048, %s18, [#allocation3], 128, 128, 8
    $region5: #{tpu_custom_call.1} parent=1 // pred_fallthru
      _
    // Predicated region
    $region6: #{tpu_custom_call.1} parent=1 // pred_check
      _
    $region7: #{tpu_custom_call.1} parent=1 // pred_check_branch
      %25 = sbr.rel (0) target = $region9
    $region8: #{tpu_custom_call.1} parent=1 // pred_region
      %27 = vsyncadd [#allocation6], 0
      %s28 = sshll.u32 %s1, 4
      %s29 = int_to_ptr.hbm [resolvable:$true] %s28
      %s30 = sshll.u32 [#allocation5], 4
      %s31 = int_to_ptr.vmem [resolvable:$true] %s30
      %36 = dma.hbm_to_vmem [thread:$0]  %s29, 4096, %s31, [#allocation6], 128, 128, 8
    $region9: #{tpu_custom_call.1} parent=1 // pred_fallthru
      _
    // Predicated region
    $region10: #{tpu_custom_call.1} parent=1 // pred_check
      _
    $region11: #{tpu_custom_call.1} parent=1 // pred_check_branch
      %38 = sbr.rel (0) target = $region13
    $region12: #{tpu_custom_call.1} parent=1 // pred_region
      %40 = vsyncadd [#allocation6], 0
      %s42 = sshll.u32 %s2, 4
      %s43 = int_to_ptr.hbm [resolvable:$true] %s42
      %s44 = sshll.u32 [#allocation7], 4
      %s45 = int_to_ptr.vmem [resolvable:$true] %s44
      %47 = dma.hbm_to_vmem [thread:$0]  %s43, 32, %s45, [#allocation6]
    $region13: #{tpu_custom_call.1} parent=1 // pred_fallthru
      _
    // Predicated region
    $region14: #{tpu_custom_call.1} parent=1 // pred_check
      _
    $region15: #{tpu_custom_call.1} parent=1 // pred_check_branch
      %49 = sbr.rel (0) target = $region17
    $region16: #{tpu_custom_call.1} parent=1 // pred_region
      %51 = dma.done [#allocation3], 2048
    $region17: #{tpu_custom_call.1} parent=1 // pred_fallthru
      _
    // Predicated region
    $region18: #{tpu_custom_call.1} parent=1 // pred_check
      _
    $region19: #{tpu_custom_call.1} parent=1 // pred_check_branch
      %53 = sbr.rel (0) target = $region21
    $region20: #{tpu_custom_call.1} parent=1 // pred_region
      %55 = dma.done [#allocation6], 4096
    $region21: #{tpu_custom_call.1} parent=1 // pred_fallthru
      _
    // Predicated region
    $region22: #{tpu_custom_call.1} parent=1 // pred_check
      _
    $region23: #{tpu_custom_call.1} parent=1 // pred_check_branch
      %57 = sbr.rel (0) target = $region25
    $region24: #{tpu_custom_call.1} parent=1 // pred_region
      %59 = dma.done [#allocation6], 32
    $region25: #{tpu_custom_call.1} parent=1 // pred_fallthru
      _
    %p60 = scmp.eq.s32.totalorder 0, 0
    // Predicated region
    $region26: #{tpu_custom_call.1} parent=1 // pred_check
      %p61 = pneg %p60
    $region27: #{tpu_custom_call.1} parent=1 // pred_check_branch
      %63 = sbr.rel (%p61) target = $region29
    $region28: #{tpu_custom_call.1} parent=1 // pred_region
      %v64 = vld [vmem:[#allocation7] sm:$0x3]
      %v66 = vperm.slane %v64, 0
      %v67 = vperm.slane %v64, 1
      %70 = vst [vmem:[#allocation8] sm:$0xff] %v66
      %71 = vst [vmem:[#allocation8 + $0x8] sm:$0xff] %v67
      %72 = vst [vmem:[#allocation8 + $0x10] sm:$0xff] %v66
      %73 = vst [vmem:[#allocation8 + $0x18] sm:$0xff] %v67
      %74 = vst [vmem:[#allocation8 + $0x20] sm:$0xff] %v66
      %75 = vst [vmem:[#allocation8 + $0x28] sm:$0xff] %v67
      %76 = vst [vmem:[#allocation8 + $0x30] sm:$0xff] %v66
      %77 = vst [vmem:[#allocation8 + $0x38] sm:$0xff] %v67
      %78 = vst [vmem:[#allocation8 + $0x40] sm:$0xff] %v66
      %79 = vst [vmem:[#allocation8 + $0x48] sm:$0xff] %v67
      %80 = vst [vmem:[#allocation8 + $0x50] sm:$0xff] %v66
      %81 = vst [vmem:[#allocation8 + $0x58] sm:$0xff] %v67
      %82 = vst [vmem:[#allocation8 + $0x60] sm:$0xff] %v66
      %83 = vst [vmem:[#allocation8 + $0x68] sm:$0xff] %v67
      %84 = vst [vmem:[#allocation8 + $0x70] sm:$0xff] %v66
      %85 = vst [vmem:[#allocation8 + $0x78] sm:$0xff] %v67
      %86 = vst [vmem:[#allocation8 + $0x80] sm:$0xff] %v66
      %87 = vst [vmem:[#allocation8 + $0x88] sm:$0xff] %v67
      %88 = vst [vmem:[#allocation8 + $0x90] sm:$0xff] %v66
      %89 = vst [vmem:[#allocation8 + $0x98] sm:$0xff] %v67
      %90 = vst [vmem:[#allocation8 + $0xa0] sm:$0xff] %v66
      %91 = vst [vmem:[#allocation8 + $0xa8] sm:$0xff] %v67
      %92 = vst [vmem:[#allocation8 + $0xb0] sm:$0xff] %v66
      %93 = vst [vmem:[#allocation8 + $0xb8] sm:$0xff] %v67
      %94 = vst [vmem:[#allocation8 + $0xc0] sm:$0xff] %v66
      %95 = vst [vmem:[#allocation8 + $0xc8] sm:$0xff] %v67
      %96 = vst [vmem:[#allocation8 + $0xd0] sm:$0xff] %v66
      %97 = vst [vmem:[#allocation8 + $0xd8] sm:$0xff] %v67
      %98 = vst [vmem:[#allocation8 + $0xe0] sm:$0xff] %v66
      %99 = vst [vmem:[#allocation8 + $0xe8] sm:$0xff] %v67
      %100 = vst [vmem:[#allocation8 + $0xf0] sm:$0xff] %v66
      %101 = vst [vmem:[#allocation8 + $0xf8] sm:$0xff] %v67
    $region29: #{tpu_custom_call.1} parent=1 // pred_fallthru
      _
    %v102 = vld [vmem:[#allocation8] sm:$0xff]
    %v103 = vld [vmem:[#allocation8 + $0x8] sm:$0xff]
    %v104 = vld [vmem:[#allocation8 + $0x10] sm:$0xff]
    %v105 = vld [vmem:[#allocation8 + $0x18] sm:$0xff]
    %v106 = vld [vmem:[#allocation8 + $0x20] sm:$0xff]
    %v107 = vld [vmem:[#allocation8 + $0x28] sm:$0xff]
    %v108 = vld [vmem:[#allocation8 + $0x30] sm:$0xff]
    %v109 = vld [vmem:[#allocation8 + $0x38] sm:$0xff]
    %v110 = vld [vmem:[#allocation8 + $0x40] sm:$0xff]
    %v111 = vld [vmem:[#allocation8 + $0x48] sm:$0xff]
    %v112 = vld [vmem:[#allocation8 + $0x50] sm:$0xff]
    %v113 = vld [vmem:[#allocation8 + $0x58] sm:$0xff]
    %v114 = vld [vmem:[#allocation8 + $0x60] sm:$0xff]
    %v115 = vld [vmem:[#allocation8 + $0x68] sm:$0xff]
    %v116 = vld [vmem:[#allocation8 + $0x70] sm:$0xff]
    %v117 = vld [vmem:[#allocation8 + $0x78] sm:$0xff]
    %v118 = vld [vmem:[#allocation8 + $0x80] sm:$0xff]
    %v119 = vld [vmem:[#allocation8 + $0x88] sm:$0xff]
    %v120 = vld [vmem:[#allocation8 + $0x90] sm:$0xff]
    %v121 = vld [vmem:[#allocation8 + $0x98] sm:$0xff]
    %v122 = vld [vmem:[#allocation8 + $0xa0] sm:$0xff]
    %v123 = vld [vmem:[#allocation8 + $0xa8] sm:$0xff]
    %v124 = vld [vmem:[#allocation8 + $0xb0] sm:$0xff]
    %v125 = vld [vmem:[#allocation8 + $0xb8] sm:$0xff]
    %v126 = vld [vmem:[#allocation8 + $0xc0] sm:$0xff]
    %v127 = vld [vmem:[#allocation8 + $0xc8] sm:$0xff]
    %v128 = vld [vmem:[#allocation8 + $0xd0] sm:$0xff]
    %v129 = vld [vmem:[#allocation8 + $0xd8] sm:$0xff]
    %v130 = vld [vmem:[#allocation8 + $0xe0] sm:$0xff]
    %v131 = vld [vmem:[#allocation8 + $0xe8] sm:$0xff]
    %v132 = vld [vmem:[#allocation8 + $0xf0] sm:$0xff]
    %v133 = vld [vmem:[#allocation8 + $0xf8] sm:$0xff]
    %v134 = vld [vmem:[#allocation2] sm:$0xff]
    %v135 = vld [vmem:[#allocation2 + $0x8] sm:$0xff]
    %v136 = vld [vmem:[#allocation2 + $0x10] sm:$0xff]
    %v137 = vld [vmem:[#allocation2 + $0x18] sm:$0xff]
    %v138 = vld [vmem:[#allocation2 + $0x20] sm:$0xff]
    %v139 = vld [vmem:[#allocation2 + $0x28] sm:$0xff]
    %v140 = vld [vmem:[#allocation2 + $0x30] sm:$0xff]
    %v141 = vld [vmem:[#allocation2 + $0x38] sm:$0xff]
    %v142 = vld [vmem:[#allocation2 + $0x40] sm:$0xff]
    %v143 = vld [vmem:[#allocation2 + $0x48] sm:$0xff]
    %v144 = vld [vmem:[#allocation2 + $0x50] sm:$0xff]
    %v145 = vld [vmem:[#allocation2 + $0x58] sm:$0xff]
    %v146 = vld [vmem:[#allocation2 + $0x60] sm:$0xff]
    %v147 = vld [vmem:[#allocation2 + $0x68] sm:$0xff]
    %v148 = vld [vmem:[#allocation2 + $0x70] sm:$0xff]
    %v149 = vld [vmem:[#allocation2 + $0x78] sm:$0xff]
    %v150 = vld [vmem:[#allocation5] sm:$0xff]
    %v151 = vld [vmem:[#allocation5 + $0x8] sm:$0xff]
    %v152 = vld [vmem:[#allocation5 + $0x10] sm:$0xff]
    %v153 = vld [vmem:[#allocation5 + $0x18] sm:$0xff]
    %v154 = vld [vmem:[#allocation5 + $0x20] sm:$0xff]
    %v155 = vld [vmem:[#allocation5 + $0x28] sm:$0xff]
    %v156 = vld [vmem:[#allocation5 + $0x30] sm:$0xff]
    %v157 = vld [vmem:[#allocation5 + $0x38] sm:$0xff]
    %v158 = vld [vmem:[#allocation5 + $0x40] sm:$0xff]
    %v159 = vld [vmem:[#allocation5 + $0x48] sm:$0xff]
    %v160 = vld [vmem:[#allocation5 + $0x50] sm:$0xff]
    %v161 = vld [vmem:[#allocation5 + $0x58] sm:$0xff]
    %v162 = vld [vmem:[#allocation5 + $0x60] sm:$0xff]
    %v163 = vld [vmem:[#allocation5 + $0x68] sm:$0xff]
    %v164 = vld [vmem:[#allocation5 + $0x70] sm:$0xff]
    %v165 = vld [vmem:[#allocation5 + $0x78] sm:$0xff]
    %v166 = vld [vmem:[#allocation5 + $0x80] sm:$0xff]
    %v167 = vld [vmem:[#allocation5 + $0x88] sm:$0xff]
    %v168 = vld [vmem:[#allocation5 + $0x90] sm:$0xff]
    %v169 = vld [vmem:[#allocation5 + $0x98] sm:$0xff]
    %v170 = vld [vmem:[#allocation5 + $0xa0] sm:$0xff]
    %v171 = vld [vmem:[#allocation5 + $0xa8] sm:$0xff]
    %v172 = vld [vmem:[#allocation5 + $0xb0] sm:$0xff]
    %v173 = vld [vmem:[#allocation5 + $0xb8] sm:$0xff]
    %v174 = vld [vmem:[#allocation5 + $0xc0] sm:$0xff]
    %v175 = vld [vmem:[#allocation5 + $0xc8] sm:$0xff]
    %v176 = vld [vmem:[#allocation5 + $0xd0] sm:$0xff]
    %v177 = vld [vmem:[#allocation5 + $0xd8] sm:$0xff]
    %v178 = vld [vmem:[#allocation5 + $0xe0] sm:$0xff]
    %v179 = vld [vmem:[#allocation5 + $0xe8] sm:$0xff]
    %v180 = vld [vmem:[#allocation5 + $0xf0] sm:$0xff]
    %v181 = vld [vmem:[#allocation5 + $0xf8] sm:$0xff]
    %v198 = vunpack.c.l.b16 %v134
    %v199 = vunpack.c.h.b16 %v134
    %v200 = vunpack.c.l.b16 %v135
    %v201 = vunpack.c.h.b16 %v135
    %v202 = vunpack.c.l.b16 %v136
    %v203 = vunpack.c.h.b16 %v136
    %v204 = vunpack.c.l.b16 %v137
    %v205 = vunpack.c.h.b16 %v137
    %v206 = vunpack.c.l.b16 %v138
    %v207 = vunpack.c.h.b16 %v138
    %v208 = vunpack.c.l.b16 %v139
    %v209 = vunpack.c.h.b16 %v139
    %v210 = vunpack.c.l.b16 %v140
    %v211 = vunpack.c.h.b16 %v140
    %v212 = vunpack.c.l.b16 %v141
    %v213 = vunpack.c.h.b16 %v141
    %v214 = vunpack.c.l.b16 %v142
    %v215 = vunpack.c.h.b16 %v142
    %v216 = vunpack.c.l.b16 %v143
    %v217 = vunpack.c.h.b16 %v143
    %v218 = vunpack.c.l.b16 %v144
    %v219 = vunpack.c.h.b16 %v144
    %v220 = vunpack.c.l.b16 %v145
    %v221 = vunpack.c.h.b16 %v145
    %v222 = vunpack.c.l.b16 %v146
    %v223 = vunpack.c.h.b16 %v146
    %v224 = vunpack.c.l.b16 %v147
    %v225 = vunpack.c.h.b16 %v147
    %v226 = vunpack.c.l.b16 %v148
    %v227 = vunpack.c.h.b16 %v148
    %v228 = vunpack.c.l.b16 %v149
    %v229 = vunpack.c.h.b16 %v149
    %v230 = vpack.c.b16 %v200, %v198
    %v231 = vpack.c.b16 %v201, %v199
    %v232 = vpack.c.b16 %v204, %v202
    %v233 = vpack.c.b16 %v205, %v203
    %v234 = vpack.c.b16 %v208, %v206
    %v235 = vpack.c.b16 %v209, %v207
    %v236 = vpack.c.b16 %v212, %v210
    %v237 = vpack.c.b16 %v213, %v211
    %v238 = vpack.c.b16 %v216, %v214
    %v239 = vpack.c.b16 %v217, %v215
    %v240 = vpack.c.b16 %v220, %v218
    %v241 = vpack.c.b16 %v221, %v219
    %v242 = vpack.c.b16 %v224, %v222
    %v243 = vpack.c.b16 %v225, %v223
    %v244 = vpack.c.b16 %v228, %v226
    %v245 = vpack.c.b16 %v229, %v227
    %v294 = vunpack.c.l.b16 %v150
    %v295 = vunpack.c.h.b16 %v150
    %v296 = vunpack.c.l.b16 %v151
    %v297 = vunpack.c.h.b16 %v151
    %v298 = vunpack.c.l.b16 %v152
    %v299 = vunpack.c.h.b16 %v152
    %v300 = vunpack.c.l.b16 %v153
    %v301 = vunpack.c.h.b16 %v153
    %v302 = vunpack.c.l.b16 %v154
    %v303 = vunpack.c.h.b16 %v154
    %v304 = vunpack.c.l.b16 %v155
    %v305 = vunpack.c.h.b16 %v155
    %v306 = vunpack.c.l.b16 %v156
    %v307 = vunpack.c.h.b16 %v156
    %v308 = vunpack.c.l.b16 %v157
    %v309 = vunpack.c.h.b16 %v157
    %v310 = vunpack.c.l.b16 %v158
    %v311 = vunpack.c.h.b16 %v158
    %v312 = vunpack.c.l.b16 %v159
    %v313 = vunpack.c.h.b16 %v159
    %v314 = vunpack.c.l.b16 %v160
    %v315 = vunpack.c.h.b16 %v160
    %v316 = vunpack.c.l.b16 %v161
    %v317 = vunpack.c.h.b16 %v161
    %v318 = vunpack.c.l.b16 %v162
    %v319 = vunpack.c.h.b16 %v162
    %v320 = vunpack.c.l.b16 %v163
    %v321 = vunpack.c.h.b16 %v163
    %v322 = vunpack.c.l.b16 %v164
    %v323 = vunpack.c.h.b16 %v164
    %v324 = vunpack.c.l.b16 %v165
    %v325 = vunpack.c.h.b16 %v165
    %v326 = vunpack.c.l.b16 %v166
    %v327 = vunpack.c.h.b16 %v166
    %v328 = vunpack.c.l.b16 %v167
    %v329 = vunpack.c.h.b16 %v167
    %v330 = vunpack.c.l.b16 %v168
    %v331 = vunpack.c.h.b16 %v168
    %v332 = vunpack.c.l.b16 %v169
    %v333 = vunpack.c.h.b16 %v169
    %v334 = vunpack.c.l.b16 %v170
    %v335 = vunpack.c.h.b16 %v170
    %v336 = vunpack.c.l.b16 %v171
    %v337 = vunpack.c.h.b16 %v171
    %v338 = vunpack.c.l.b16 %v172
    %v339 = vunpack.c.h.b16 %v172
    %v340 = vunpack.c.l.b16 %v173
    %v341 = vunpack.c.h.b16 %v173
    %v342 = vunpack.c.l.b16 %v174
    %v343 = vunpack.c.h.b16 %v174
    %v344 = vunpack.c.l.b16 %v175
    %v345 = vunpack.c.h.b16 %v175
    %v346 = vunpack.c.l.b16 %v176
    %v347 = vunpack.c.h.b16 %v176
    %v348 = vunpack.c.l.b16 %v177
    %v349 = vunpack.c.h.b16 %v177
    %v350 = vunpack.c.l.b16 %v178
    %v351 = vunpack.c.h.b16 %v178
    %v352 = vunpack.c.l.b16 %v179
    %v353 = vunpack.c.h.b16 %v179
    %v354 = vunpack.c.l.b16 %v180
    %v355 = vunpack.c.h.b16 %v180
    %v356 = vunpack.c.l.b16 %v181
    %v357 = vunpack.c.h.b16 %v181
    %v358 = vpack.c.b16 %v296, %v294
    %v359 = vpack.c.b16 %v297, %v295
    %v360 = vpack.c.b16 %v300, %v298
    %v361 = vpack.c.b16 %v301, %v299
    %v362 = vpack.c.b16 %v304, %v302
    %v363 = vpack.c.b16 %v305, %v303
    %v364 = vpack.c.b16 %v308, %v306
    %v365 = vpack.c.b16 %v309, %v307
    %v366 = vpack.c.b16 %v312, %v310
    %v367 = vpack.c.b16 %v313, %v311
    %v368 = vpack.c.b16 %v316, %v314
    %v369 = vpack.c.b16 %v317, %v315
    %v370 = vpack.c.b16 %v320, %v318
    %v371 = vpack.c.b16 %v321, %v319
    %v372 = vpack.c.b16 %v324, %v322
    %v373 = vpack.c.b16 %v325, %v323
    %v374 = vpack.c.b16 %v328, %v326
    %v375 = vpack.c.b16 %v329, %v327
    %v376 = vpack.c.b16 %v332, %v330
    %v377 = vpack.c.b16 %v333, %v331
    %v378 = vpack.c.b16 %v336, %v334
    %v379 = vpack.c.b16 %v337, %v335
    %v380 = vpack.c.b16 %v340, %v338
    %v381 = vpack.c.b16 %v341, %v339
    %v382 = vpack.c.b16 %v344, %v342
    %v383 = vpack.c.b16 %v345, %v343
    %v384 = vpack.c.b16 %v348, %v346
    %v385 = vpack.c.b16 %v349, %v347
    %v386 = vpack.c.b16 %v352, %v350
    %v387 = vpack.c.b16 %v353, %v351
    %v388 = vpack.c.b16 %v356, %v354
    %v389 = vpack.c.b16 %v357, %v355
    %422 = vmatpush.bf16.msra.mxu0 %v372
    %423 = vmatpush.bf16.msra.mxu0 %v370
    %424 = vmatpush.bf16.msra.mxu0 %v368
    %425 = vmatpush.bf16.msra.mxu0 %v366
    %426 = vmatpush.bf16.msra.mxu0 %v364
    %427 = vmatpush.bf16.msra.mxu0 %v362
    %428 = vmatpush.bf16.msra.mxu0 %v360
    %429 = vmatpush.bf16.msra.mxu0 %v358
    %430 = vmatmul.bf16.gmra.mxu0 %v230
    %v431 = vpop.f32.mrf.mxu0
    %v432 = vadd.f32 0.0, %v431
    %v433 = vpop.f32.mrf.mxu0
    %v434 = vadd.f32 0.0, %v433
    %435 = vmatmul.bf16.gmra.mxu0 %v232
    %v436 = vpop.f32.mrf.mxu0
    %v437 = vadd.f32 0.0, %v436
    %v438 = vpop.f32.mrf.mxu0
    %v439 = vadd.f32 0.0, %v438
    %440 = vmatmul.bf16.gmra.mxu0 %v234
    %v441 = vpop.f32.mrf.mxu0
    %v442 = vadd.f32 0.0, %v441
    %v443 = vpop.f32.mrf.mxu0
    %v444 = vadd.f32 0.0, %v443
    %445 = vmatmul.bf16.gmra.mxu0 %v236
    %v446 = vpop.f32.mrf.mxu0
    %v447 = vadd.f32 0.0, %v446
    %v448 = vpop.f32.mrf.mxu0
    %v449 = vadd.f32 0.0, %v448
    %450 = vmatmul.bf16.gmra.mxu0 %v238
    %v451 = vpop.f32.mrf.mxu0
    %v452 = vadd.f32 0.0, %v451
    %v453 = vpop.f32.mrf.mxu0
    %v454 = vadd.f32 0.0, %v453
    %455 = vmatmul.bf16.gmra.mxu0 %v240
    %v456 = vpop.f32.mrf.mxu0
    %v457 = vadd.f32 0.0, %v456
    %v458 = vpop.f32.mrf.mxu0
    %v459 = vadd.f32 0.0, %v458
    %460 = vmatmul.bf16.gmra.mxu0 %v242
    %v461 = vpop.f32.mrf.mxu0
    %v462 = vadd.f32 0.0, %v461
    %v463 = vpop.f32.mrf.mxu0
    %v464 = vadd.f32 0.0, %v463
    %465 = vmatmul.bf16.gmra.mxu0 %v244
    %v466 = vpop.f32.mrf.mxu0
    %v467 = vadd.f32 0.0, %v466
    %v468 = vpop.f32.mrf.mxu0
    %v469 = vadd.f32 0.0, %v468
    %470 = vdwg.mxu0
    %471 = vmatpush.bf16.msra.mxu0 %v388
    %472 = vmatpush.bf16.msra.mxu0 %v386
    %473 = vmatpush.bf16.msra.mxu0 %v384
    %474 = vmatpush.bf16.msra.mxu0 %v382
    %475 = vmatpush.bf16.msra.mxu0 %v380
    %476 = vmatpush.bf16.msra.mxu0 %v378
    %477 = vmatpush.bf16.msra.mxu0 %v376
    %478 = vmatpush.bf16.msra.mxu0 %v374
    %479 = vmatmul.bf16.gmra.mxu0 %v231
    %v480 = vpop.f32.mrf.mxu0
    %v481 = vadd.f32 %v432, %v480
    %v482 = vpop.f32.mrf.mxu0
    %v483 = vadd.f32 %v434, %v482
    %484 = vmatmul.bf16.gmra.mxu0 %v233
    %v485 = vpop.f32.mrf.mxu0
    %v486 = vadd.f32 %v437, %v485
    %v487 = vpop.f32.mrf.mxu0
    %v488 = vadd.f32 %v439, %v487
    %489 = vmatmul.bf16.gmra.mxu0 %v235
    %v490 = vpop.f32.mrf.mxu0
    %v491 = vadd.f32 %v442, %v490
    %v492 = vpop.f32.mrf.mxu0
    %v493 = vadd.f32 %v444, %v492
    %494 = vmatmul.bf16.gmra.mxu0 %v237
    %v495 = vpop.f32.mrf.mxu0
    %v496 = vadd.f32 %v447, %v495
    %v497 = vpop.f32.mrf.mxu0
    %v498 = vadd.f32 %v449, %v497
    %499 = vmatmul.bf16.gmra.mxu0 %v239
    %v500 = vpop.f32.mrf.mxu0
    %v501 = vadd.f32 %v452, %v500
    %v502 = vpop.f32.mrf.mxu0
    %v503 = vadd.f32 %v454, %v502
    %504 = vmatmul.bf16.gmra.mxu0 %v241
    %v505 = vpop.f32.mrf.mxu0
    %v506 = vadd.f32 %v457, %v505
    %v507 = vpop.f32.mrf.mxu0
    %v508 = vadd.f32 %v459, %v507
    %509 = vmatmul.bf16.gmra.mxu0 %v243
    %v510 = vpop.f32.mrf.mxu0
    %v511 = vadd.f32 %v462, %v510
    %v512 = vpop.f32.mrf.mxu0
    %v513 = vadd.f32 %v464, %v512
    %514 = vmatmul.bf16.gmra.mxu0 %v245
    %v515 = vpop.f32.mrf.mxu0
    %v516 = vadd.f32 %v467, %v515
    %v517 = vpop.f32.mrf.mxu0
    %v518 = vadd.f32 %v469, %v517
    %519 = vdwg.mxu0
    %520 = vmatpush.bf16.msra.mxu0 %v373
    %521 = vmatpush.bf16.msra.mxu0 %v371
    %522 = vmatpush.bf16.msra.mxu0 %v369
    %523 = vmatpush.bf16.msra.mxu0 %v367
    %524 = vmatpush.bf16.msra.mxu0 %v365
    %525 = vmatpush.bf16.msra.mxu0 %v363
    %526 = vmatpush.bf16.msra.mxu0 %v361
    %527 = vmatpush.bf16.msra.mxu0 %v359
    %528 = vmatmul.bf16.gmra.mxu0 %v230
    %v529 = vpop.f32.mrf.mxu0
    %v530 = vadd.f32 0.0, %v529
    %v531 = vpop.f32.mrf.mxu0
    %v532 = vadd.f32 0.0, %v531
    %533 = vmatmul.bf16.gmra.mxu0 %v232
    %v534 = vpop.f32.mrf.mxu0
    %v535 = vadd.f32 0.0, %v534
    %v536 = vpop.f32.mrf.mxu0
    %v537 = vadd.f32 0.0, %v536
    %538 = vmatmul.bf16.gmra.mxu0 %v234
    %v539 = vpop.f32.mrf.mxu0
    %v540 = vadd.f32 0.0, %v539
    %v541 = vpop.f32.mrf.mxu0
    %v542 = vadd.f32 0.0, %v541
    %543 = vmatmul.bf16.gmra.mxu0 %v236
    %v544 = vpop.f32.mrf.mxu0
    %v545 = vadd.f32 0.0, %v544
    %v546 = vpop.f32.mrf.mxu0
    %v547 = vadd.f32 0.0, %v546
    %548 = vmatmul.bf16.gmra.mxu0 %v238
    %v549 = vpop.f32.mrf.mxu0
    %v550 = vadd.f32 0.0, %v549
    %v551 = vpop.f32.mrf.mxu0
    %v552 = vadd.f32 0.0, %v551
    %553 = vmatmul.bf16.gmra.mxu0 %v240
    %v554 = vpop.f32.mrf.mxu0
    %v555 = vadd.f32 0.0, %v554
    %v556 = vpop.f32.mrf.mxu0
    %v557 = vadd.f32 0.0, %v556
    %558 = vmatmul.bf16.gmra.mxu0 %v242
    %v559 = vpop.f32.mrf.mxu0
    %v560 = vadd.f32 0.0, %v559
    %v561 = vpop.f32.mrf.mxu0
    %v562 = vadd.f32 0.0, %v561
    %563 = vmatmul.bf16.gmra.mxu0 %v244
    %v564 = vpop.f32.mrf.mxu0
    %v565 = vadd.f32 0.0, %v564
    %v566 = vpop.f32.mrf.mxu0
    %v567 = vadd.f32 0.0, %v566
    %568 = vdwg.mxu0
    %569 = vmatpush.bf16.msra.mxu0 %v389
    %570 = vmatpush.bf16.msra.mxu0 %v387
    %571 = vmatpush.bf16.msra.mxu0 %v385
    %572 = vmatpush.bf16.msra.mxu0 %v383
    %573 = vmatpush.bf16.msra.mxu0 %v381
    %574 = vmatpush.bf16.msra.mxu0 %v379
    %575 = vmatpush.bf16.msra.mxu0 %v377
    %576 = vmatpush.bf16.msra.mxu0 %v375
    %577 = vmatmul.bf16.gmra.mxu0 %v231
    %v578 = vpop.f32.mrf.mxu0
    %v579 = vadd.f32 %v530, %v578
    %v580 = vpop.f32.mrf.mxu0
    %v581 = vadd.f32 %v532, %v580
    %582 = vmatmul.bf16.gmra.mxu0 %v233
    %v583 = vpop.f32.mrf.mxu0
    %v584 = vadd.f32 %v535, %v583
    %v585 = vpop.f32.mrf.mxu0
    %v586 = vadd.f32 %v537, %v585
    %587 = vmatmul.bf16.gmra.mxu0 %v235
    %v588 = vpop.f32.mrf.mxu0
    %v589 = vadd.f32 %v540, %v588
    %v590 = vpop.f32.mrf.mxu0
    %v591 = vadd.f32 %v542, %v590
    %592 = vmatmul.bf16.gmra.mxu0 %v237
    %v593 = vpop.f32.mrf.mxu0
    %v594 = vadd.f32 %v545, %v593
    %v595 = vpop.f32.mrf.mxu0
    %v596 = vadd.f32 %v547, %v595
    %597 = vmatmul.bf16.gmra.mxu0 %v239
    %v598 = vpop.f32.mrf.mxu0
    %v599 = vadd.f32 %v550, %v598
    %v600 = vpop.f32.mrf.mxu0
    %v601 = vadd.f32 %v552, %v600
    %602 = vmatmul.bf16.gmra.mxu0 %v241
    %v603 = vpop.f32.mrf.mxu0
    %v604 = vadd.f32 %v555, %v603
    %v605 = vpop.f32.mrf.mxu0
    %v606 = vadd.f32 %v557, %v605
    %607 = vmatmul.bf16.gmra.mxu0 %v243
    %v608 = vpop.f32.mrf.mxu0
    %v609 = vadd.f32 %v560, %v608
    %v610 = vpop.f32.mrf.mxu0
    %v611 = vadd.f32 %v562, %v610
    %612 = vmatmul.bf16.gmra.mxu0 %v245
    %v613 = vpop.f32.mrf.mxu0
    %v614 = vadd.f32 %v565, %v613
    %v615 = vpop.f32.mrf.mxu0
    %v616 = vadd.f32 %v567, %v615
    %617 = vdwg.mxu0
    %v618 = vadd.f32 %v102, %v481
    %v619 = vadd.f32 %v103, %v579
    %v620 = vadd.f32 %v104, %v483
    %v621 = vadd.f32 %v105, %v581
    %v622 = vadd.f32 %v106, %v486
    %v623 = vadd.f32 %v107, %v584
    %v624 = vadd.f32 %v108, %v488
    %v625 = vadd.f32 %v109, %v586
    %v626 = vadd.f32 %v110, %v491
    %v627 = vadd.f32 %v111, %v589
    %v628 = vadd.f32 %v112, %v493
    %v629 = vadd.f32 %v113, %v591
    %v630 = vadd.f32 %v114, %v496
    %v631 = vadd.f32 %v115, %v594
    %v632 = vadd.f32 %v116, %v498
    %v633 = vadd.f32 %v117, %v596
    %v634 = vadd.f32 %v118, %v501
    %v635 = vadd.f32 %v119, %v599
    %v636 = vadd.f32 %v120, %v503
    %v637 = vadd.f32 %v121, %v601
    %v638 = vadd.f32 %v122, %v506
    %v639 = vadd.f32 %v123, %v604
    %v640 = vadd.f32 %v124, %v508
    %v641 = vadd.f32 %v125, %v606
    %v642 = vadd.f32 %v126, %v511
    %v643 = vadd.f32 %v127, %v609
    %v644 = vadd.f32 %v128, %v513
    %v645 = vadd.f32 %v129, %v611
    %v646 = vadd.f32 %v130, %v516
    %v647 = vadd.f32 %v131, %v614
    %v648 = vadd.f32 %v132, %v518
    %v649 = vadd.f32 %v133, %v616
    %650 = vst [vmem:[#allocation8] sm:$0xff] %v618
    %651 = vst [vmem:[#allocation8 + $0x8] sm:$0xff] %v619
    %652 = vst [vmem:[#allocation8 + $0x10] sm:$0xff] %v620
    %653 = vst [vmem:[#allocation8 + $0x18] sm:$0xff] %v621
    %654 = vst [vmem:[#allocation8 + $0x20] sm:$0xff] %v622
    %655 = vst [vmem:[#allocation8 + $0x28] sm:$0xff] %v623
    %656 = vst [vmem:[#allocation8 + $0x30] sm:$0xff] %v624
    %657 = vst [vmem:[#allocation8 + $0x38] sm:$0xff] %v625
    %658 = vst [vmem:[#allocation8 + $0x40] sm:$0xff] %v626
    %659 = vst [vmem:[#allocation8 + $0x48] sm:$0xff] %v627
    %660 = vst [vmem:[#allocation8 + $0x50] sm:$0xff] %v628
    %661 = vst [vmem:[#allocation8 + $0x58] sm:$0xff] %v629
    %662 = vst [vmem:[#allocation8 + $0x60] sm:$0xff] %v630
    %663 = vst [vmem:[#allocation8 + $0x68] sm:$0xff] %v631
    %664 = vst [vmem:[#allocation8 + $0x70] sm:$0xff] %v632
    %665 = vst [vmem:[#allocation8 + $0x78] sm:$0xff] %v633
    %666 = vst [vmem:[#allocation8 + $0x80] sm:$0xff] %v634
    %667 = vst [vmem:[#allocation8 + $0x88] sm:$0xff] %v635
    %668 = vst [vmem:[#allocation8 + $0x90] sm:$0xff] %v636
    %669 = vst [vmem:[#allocation8 + $0x98] sm:$0xff] %v637
    %670 = vst [vmem:[#allocation8 + $0xa0] sm:$0xff] %v638
    %671 = vst [vmem:[#allocation8 + $0xa8] sm:$0xff] %v639
    %672 = vst [vmem:[#allocation8 + $0xb0] sm:$0xff] %v640
    %673 = vst [vmem:[#allocation8 + $0xb8] sm:$0xff] %v641
    %674 = vst [vmem:[#allocation8 + $0xc0] sm:$0xff] %v642
    %675 = vst [vmem:[#allocation8 + $0xc8] sm:$0xff] %v643
    %676 = vst [vmem:[#allocation8 + $0xd0] sm:$0xff] %v644
    %677 = vst [vmem:[#allocation8 + $0xd8] sm:$0xff] %v645
    %678 = vst [vmem:[#allocation8 + $0xe0] sm:$0xff] %v646
    %679 = vst [vmem:[#allocation8 + $0xe8] sm:$0xff] %v647
    %680 = vst [vmem:[#allocation8 + $0xf0] sm:$0xff] %v648
    %681 = vst [vmem:[#allocation8 + $0xf8] sm:$0xff] %v649
    // Predicated region
    $region30: #{tpu_custom_call.1} parent=1 // pred_check
      _
    $region31: #{tpu_custom_call.1} parent=1 // pred_check_branch
      %683 = sbr.rel (0) target = $region33
    $region32: #{tpu_custom_call.1} parent=1 // pred_region
      %685 = vsyncadd [#allocation4], 0
      %s686 = sshll.u32 [#allocation8], 4
      %s687 = int_to_ptr.vmem [resolvable:$true] %s686
      %s688 = sshll.u32 %s3, 4
      %s689 = int_to_ptr.hbm [resolvable:$true] %s688
      %694 = dma.vmem_to_hbm [thread:$0]  %s687, 4096, %s689, [#allocation4], 256, 256, 16
    $region33: #{tpu_custom_call.1} parent=1 // pred_fallthru
      _
    // Predicated region
    $region34: #{tpu_custom_call.1} parent=1 // pred_check
      _
    $region35: #{tpu_custom_call.1} parent=1 // pred_check_branch
      %696 = sbr.rel (0) target = $region37
    $region36: #{tpu_custom_call.1} parent=1 // pred_region
      %698 = dma.done [#allocation4], 4096
    $region37: #{tpu_custom_call.1} parent=1 // pred_fallthru
      _
    %699 = vsyncpa [#allocation3], 1
    %700 = vsyncpa [#allocation6], 1
    %701 = vsyncpa [#allocation4], 1

</llo_original>
